<compile_context>
chip_gen: v7x
topology: tpu7x:2x2x1
jax: 0.10.0
libtpu: 0.0.40
codegen_flags: <defaults>
</compile_context>

<pallas_src>
import functools
import math

import jax
import jax.numpy as jnp
from jax import lax
from jax.experimental import pallas as pl
from jax.experimental.pallas import tpu as pltpu

_SUBLANE = 8


def _round_up(x, m):
    return ((x + m - 1) // m) * m


def _vmem_cap_bytes():
    """Physical VMEM per TensorCore; conservative (v7x) fallback."""
    try:
        cap = getattr(pltpu.get_tpu_info(), "vmem_capacity_bytes", None)
        if cap:
            return int(cap)
    except Exception:
        pass
    return 64 * 2**20


def _choose_h_tile(H, ps, row_bytes, target_bytes):
    """Pick (th, A): th divides H, th % A == 0, A = lcm(ps, 8) when possible."""
    A = ps * _SUBLANE // math.gcd(ps, _SUBLANE)
    if H % A != 0:
        # Fall back to one full-H block per image (full-dim block is exempt
        # from the 8-sublane rule); accumulate with period ps directly.
        return H, ps
    cands = [t for t in range(A, H + 1, A) if H % t == 0]
    fitting = [t for t in cands if t * row_bytes <= target_bytes]
    return (max(fitting) if fitting else min(cands)), A


# ---------------------------------------------------------------------------
# Stage 1: stream x (NCHW) once; per image accumulate column sums
#   out[c, a, w] = sum_{h : h % A == a} x[c, h, w]
# ---------------------------------------------------------------------------
def _colsum_kernel(x_ref, out_ref):
    k = pl.program_id(1)

    @pl.when(k == 0)
    def _init():
        out_ref[...] = jnp.zeros_like(out_ref)

    blk = x_ref[...].astype(jnp.float32)            # (C, th, W)
    a_rows = out_ref.shape[1]
    th = blk.shape[1]
    s = blk[:, 0:a_rows, :]
    for i in range(1, th // a_rows):                # static, unrolled, aligned adds
        s = s + blk[:, i * a_rows:(i + 1) * a_rows, :]
    out_ref[...] += s


# ---------------------------------------------------------------------------
# Stage 2: batched head.  pooled = mean_patch @ W_e + b_e ; feat = LayerNorm;
# logits = feat @ W_fc + b_fc.  (head Dropout(p=0.5) is identity at eval and
# the head Linear was replaced by identity in ModelWrapperV7.)
# ---------------------------------------------------------------------------
def _head_kernel(mp_ref, w_embed_ref, cvec_ref, w_fc_ref, b_fc_ref,
                 logits_ref, feat_ref, *, eps):
    pooled = jnp.dot(mp_ref[...], w_embed_ref[...],
                     preferred_element_type=jnp.float32) + cvec_ref[0:1, :]
    d = pooled.shape[-1]
    mu = jnp.sum(pooled, axis=-1, keepdims=True) * (1.0 / d)
    diff = pooled - mu
    var = jnp.sum(diff * diff, axis=-1, keepdims=True) * (1.0 / d)
    feat = diff * lax.rsqrt(var + eps) * cvec_ref[1:2, :] + cvec_ref[2:3, :]
    feat_ref[...] = feat.astype(feat_ref.dtype)
    logits = jnp.dot(feat, w_fc_ref[...],
                     preferred_element_type=jnp.float32) + b_fc_ref[...]
    logits_ref[...] = logits.astype(logits_ref.dtype)


def model_wrapper_v7(x, params, patch_size=4, *, h_tile=None, interpret=False):
    """x: (B, C, H, W). Returns (logits (B, num_classes), feat (B, dim_feat))."""
    B, C, H, W = x.shape
    ps = patch_size
    assert H % ps == 0 and W % ps == 0, "H and W must be divisible by patch_size"
    T = (H // ps) * (W // ps)
    P = C * ps * ps
    D = params["w_embed"].shape[1]
    NC = params["w_fc"].shape[1]
    eps = 1e-6

    itemsize = jnp.dtype(x.dtype).itemsize
    row_bytes = C * W * itemsize
    vmem_cap = _vmem_cap_bytes()
    target_block = 4 * 2**20                       # ~4 MiB per pipeline buffer

    if h_tile is None:
        th, A = _choose_h_tile(H, ps, row_bytes, target_block)
    else:
        assert H % h_tile == 0 and h_tile % ps == 0
        assert h_tile % _SUBLANE == 0 or h_tile == H
        th = h_tile
        lcm8 = ps * _SUBLANE // math.gcd(ps, _SUBLANE)
        A = lcm8 if th % lcm8 == 0 else ps
    n_h = H // th

    # ---- stage 1 ----------------------------------------------------------
    block_bytes = C * th * W * itemsize
    out1_bytes = C * A * W * 4
    vmem1 = int(min(int(0.75 * vmem_cap),
                    max(16 * 2**20, 2 * block_bytes + 2 * out1_bytes + 4 * 2**20)))
    cost1 = pl.CostEstimate(flops=int(B * C * H * W), transcendentals=0,
                            bytes_accessed=int(x.size * itemsize + B * out1_bytes))

    colsum = pl.pallas_call(
        _colsum_kernel,
        out_shape=jax.ShapeDtypeStruct((B, C, A, W), jnp.float32),
        grid_spec=pltpu.PrefetchScalarGridSpec(
            num_scalar_prefetch=0,
            grid=(B, n_h),
            in_specs=[pl.BlockSpec((None, C, th, W), lambda b, k: (b, 0, k, 0))],
            out_specs=pl.BlockSpec((None, C, A, W), lambda b, k: (b, 0, 0, 0)),
        ),
        compiler_params=pltpu.CompilerParams(
            # TODO(synk): on v7x (2 TCs/chip), pltpu.CORE_PARALLEL on the batch
            # axis (or pl.core_map) may be needed to guarantee 2-TC sharding;
            # kept "parallel" here for portability across v5e/v6e/v7x.
            dimension_semantics=("parallel", "arbitrary"),
            vmem_limit_bytes=vmem1,
        ),
        cost_estimate=cost1,
        interpret=interpret,
    )(x)

    # ---- tiny XLA glue: (B, C, A, W) column sums -> (B, P) mean patches ----
    # Pure layout permutation on ~A/H of x's bytes; no clean Mosaic lane-reshape.
    ps_col = colsum.reshape(B, C, A // ps, ps, W).sum(axis=2)           # (B,C,ps,W)
    patch_sum = ps_col.reshape(B, C, ps, W // ps, ps).sum(axis=3)       # (B,C,ps,ps)
    mean_patch = patch_sum.reshape(B, P) * (1.0 / T)                    # (B,P) f32

    # ---- stage 2: batched head ---------------------------------------------
    bm = min(_round_up(B, _SUBLANE), 256)
    B_pad = _round_up(B, bm)
    n_b = B_pad // bm
    mp = jnp.pad(mean_patch, ((0, B_pad - B), (0, 0)))
    w_embed = jnp.asarray(params["w_embed"], jnp.float32)
    cvec = jnp.concatenate(
        [jnp.asarray(params["b_embed"], jnp.float32).reshape(1, D),
         jnp.asarray(params["gamma"], jnp.float32).reshape(1, D),
         jnp.asarray(params["beta"], jnp.float32).reshape(1, D)], axis=0)
    w_fc = jnp.asarray(params["w_fc"], jnp.float32)
    b_fc = jnp.asarray(params["b_fc"], jnp.float32).reshape(1, NC)

    head_bytes = (B_pad * P + P * D + 3 * D + D * NC + NC + B_pad * (D + NC)) * 4
    vmem2 = int(min(int(0.75 * vmem_cap),
                    max(16 * 2**20, 4 * head_bytes + 4 * 2**20)))
    cost2 = pl.CostEstimate(
        flops=int(2 * B_pad * (P * D + D * NC) + 8 * B_pad * D),
        transcendentals=int(B_pad),
        bytes_accessed=int(head_bytes))

    logits_p, feat_p = pl.pallas_call(
        functools.partial(_head_kernel, eps=eps),
        out_shape=(jax.ShapeDtypeStruct((B_pad, NC), jnp.float32),
                   jax.ShapeDtypeStruct((B_pad, D), jnp.float32)),
        grid_spec=pltpu.PrefetchScalarGridSpec(
            num_scalar_prefetch=0,
            grid=(n_b,),
            in_specs=[
                pl.BlockSpec((bm, P), lambda i: (i, 0)),
                pl.BlockSpec((P, D), lambda i: (0, 0)),
                pl.BlockSpec((3, D), lambda i: (0, 0)),
                pl.BlockSpec((D, NC), lambda i: (0, 0)),
                pl.BlockSpec((1, NC), lambda i: (0, 0)),
            ],
            out_specs=(pl.BlockSpec((bm, NC), lambda i: (i, 0)),
                       pl.BlockSpec((bm, D), lambda i: (i, 0))),
        ),
        compiler_params=pltpu.CompilerParams(
            dimension_semantics=("parallel",),
            vmem_limit_bytes=vmem2,
        ),
        cost_estimate=cost2,
        interpret=interpret,
    )(mp, w_embed, cvec, w_fc, b_fc)

    return logits_p[:B], feat_p[:B]


# ---------------------------------------------------------------------------
# Pure-JAX reference (same synthetic FeatureExtractor semantics).
# ---------------------------------------------------------------------------
def _reference(x, params, patch_size=4):
    B, C, H, W = x.shape
    ps = patch_size
    T = (H // ps) * (W // ps)
    P = C * ps * ps
    xp = x.reshape(B, C, H // ps, ps, W // ps, ps)
    xp = xp.transpose(0, 2, 4, 1, 3, 5).reshape(B, T, P).astype(jnp.float32)
    tokens = xp @ params["w_embed"] + params["b_embed"]
    pooled = tokens.mean(axis=1)
    mu = pooled.mean(axis=-1, keepdims=True)
    var = ((pooled - mu) ** 2).mean(axis=-1, keepdims=True)
    feat = (pooled - mu) / jnp.sqrt(var + 1e-6) * params["gamma"] + params["beta"]
    logits = feat @ params["w_fc"] + params["b_fc"]
    return logits, feat


def _init_params(key, patch_dim, dim_feat, num_classes):
    k1, k2, k3, _ = jax.random.split(key, 4)
    return {
        "w_embed": 0.02 * jax.random.normal(k1, (patch_dim, dim_feat), jnp.float32),
        "b_embed": jnp.zeros((1, dim_feat), jnp.float32),
        "gamma": jnp.ones((1, dim_feat), jnp.float32),
        "beta": jnp.zeros((1, dim_feat), jnp.float32),
        "w_fc": 0.02 * jax.random.normal(k2, (dim_feat, num_classes), jnp.float32),
        "b_fc": 0.01 * jax.random.normal(k3, (1, num_classes), jnp.float32),
    }


if __name__ == "__main__":
    # small shapes: B=2, C=4, H=W=16, patch=4 -> T=16 tokens, P=64, D=32, 10 classes
    B, C, H, W = 2, 4, 16, 16
    ps, dim_feat, num_classes = 4, 32, 10
    patch_dim = C * ps * ps

    key = jax.random.PRNGKey(0)
    kx, kp = jax.random.split(key)
    x = jax.random.normal(kx, (B, C, H, W), jnp.float32)
    params = _init_params(kp, patch_dim, dim_feat, num_classes)

    fwd = jax.jit(functools.partial(model_wrapper_v7, patch_size=ps))
    logits, feat = fwd(x, params)
    jax.block_until_ready((logits, feat))

    ref_logits, ref_feat = _reference(x, params, patch_size=ps)
    assert logits.shape == (B, num_classes) and feat.shape == (B, dim_feat)
    assert jnp.allclose(logits, ref_logits, atol=1e-4, rtol=1e-4), \
        float(jnp.max(jnp.abs(logits - ref_logits)))
    assert jnp.allclose(feat, ref_feat, atol=1e-4, rtol=1e-4), \
        float(jnp.max(jnp.abs(feat - ref_feat)))

    # bf16 HBM stream (halves streamed bytes on v6e/v7x): cast the input once;
    # accumulation and all head math stay f32.  Drift vs the f32 reference is
    # bounded explicitly (not just a finiteness check).
    logits_bf, feat_bf = fwd(x.astype(jnp.bfloat16), params)
    jax.block_until_ready((logits_bf, feat_bf))
    assert logits_bf.shape == (B, num_classes) and feat_bf.shape == (B, dim_feat)
    assert jnp.allclose(logits_bf, ref_logits, atol=5e-2, rtol=5e-2), \
        float(jnp.max(jnp.abs(logits_bf - ref_logits)))
    assert jnp.allclose(feat_bf, ref_feat, atol=5e-2, rtol=5e-2), \
        float(jnp.max(jnp.abs(feat_bf - ref_feat)))

    # TODO(synk): Dropout(p=0.5) in the original head is implemented as its
    # inference-mode identity; training-mode stochastic dropout is omitted.
    print("KERNEL_OK")
</pallas_src>

<mosaic_0001>
module attributes {stable_mosaic.version = 11 : i64} {
  func.func @_colsum_kernel(%arg0: i32, %arg1: i32, %arg2: memref<1x4x16x16xf32, #tpu.memory_space<vmem>>, %arg3: memref<1x4x8x16xf32, #tpu.memory_space<vmem>>) attributes {dimension_semantics = [#tpu.dimension_semantics<parallel>, #tpu.dimension_semantics<arbitrary>], iteration_bounds = array<i64: 2, 1>, scalar_prefetch = 0 : i64, scratch_operands = 0 : i64, tpu.core_type = #tpu.core_type<tc>, window_params = [{transform_indices = @transform_0, window_bounds = array<i64: 1, 4, 16, 16>}, {transform_indices = @transform_1, window_bounds = array<i64: 1, 4, 8, 16>}]} {
    %c0_i32 = arith.constant 0 : i32
    %0 = arith.cmpi eq, %arg1, %c0_i32 : i32
    %1 = arith.extui %0 : i1 to i32
    %c0_i32_0 = arith.constant 0 : i32
    %2 = arith.cmpi ne, %1, %c0_i32_0 : i32
    scf.if %2 {
      %cst = arith.constant 0.000000e+00 : f32
      %14 = vector.broadcast %cst : f32 to vector<4x8x16xf32>
      %c0_12 = arith.constant 0 : index
      %c0_13 = arith.constant 0 : index
      %c0_14 = arith.constant 0 : index
      %c0_15 = arith.constant 0 : index
      %15 = vector.load %arg3[%c0_12, %c0_13, %c0_14, %c0_15] : memref<1x4x8x16xf32, #tpu.memory_space<vmem>>, vector<1x4x8x16xf32>
      %16 = vector.shape_cast %15 : vector<1x4x8x16xf32> to vector<4x8x16xf32>
      %17 = vector.shape_cast %14 : vector<4x8x16xf32> to vector<1x4x8x16xf32>
      tpu.vector_store %arg3[%c0_12, %c0_13, %c0_14, %c0_15], %17 {strides = array<i32>} : memref<1x4x8x16xf32, #tpu.memory_space<vmem>>, vector<1x4x8x16xf32>,
    } else {
    }
    %c0 = arith.constant 0 : index
    %c0_1 = arith.constant 0 : index
    %c0_2 = arith.constant 0 : index
    %c0_3 = arith.constant 0 : index
    %3 = vector.load %arg2[%c0, %c0_1, %c0_2, %c0_3] : memref<1x4x16x16xf32, #tpu.memory_space<vmem>>, vector<1x4x16x16xf32>
    %4 = vector.shape_cast %3 : vector<1x4x16x16xf32> to vector<4x16x16xf32>
    %5 = vector.extract_strided_slice %4 {offsets = [0, 0, 0], sizes = [4, 8, 16], strides = [1, 1, 1]} : vector<4x16x16xf32> to vector<4x8x16xf32>
    %6 = vector.extract_strided_slice %4 {offsets = [0, 8, 0], sizes = [4, 8, 16], strides = [1, 1, 1]} : vector<4x16x16xf32> to vector<4x8x16xf32>
    %7 = arith.addf %5, %6 : vector<4x8x16xf32>
    %c0_4 = arith.constant 0 : index
    %c0_5 = arith.constant 0 : index
    %c0_6 = arith.constant 0 : index
    %c0_7 = arith.constant 0 : index
    %8 = vector.load %arg3[%c0_4, %c0_5, %c0_6, %c0_7] : memref<1x4x8x16xf32, #tpu.memory_space<vmem>>, vector<1x4x8x16xf32>
    %9 = vector.shape_cast %8 : vector<1x4x8x16xf32> to vector<4x8x16xf32>
    %10 = arith.addf %9, %7 : vector<4x8x16xf32>
    %c0_8 = arith.constant 0 : index
    %c0_9 = arith.constant 0 : index
    %c0_10 = arith.constant 0 : index
    %c0_11 = arith.constant 0 : index
    %11 = vector.load %arg3[%c0_8, %c0_9, %c0_10, %c0_11] : memref<1x4x8x16xf32, #tpu.memory_space<vmem>>, vector<1x4x8x16xf32>
    %12 = vector.shape_cast %11 : vector<1x4x8x16xf32> to vector<4x8x16xf32>
    %13 = vector.shape_cast %10 : vector<4x8x16xf32> to vector<1x4x8x16xf32>
    tpu.vector_store %arg3[%c0_8, %c0_9, %c0_10, %c0_11], %13 {strides = array<i32>} : memref<1x4x8x16xf32, #tpu.memory_space<vmem>>, vector<1x4x8x16xf32>,
    return
  }
  func.func @transform_0(%arg0: i32, %arg1: i32) -> (i32, i32, i32, i32) {
    %c0_i32 = arith.constant 0 : i32
    %c0_i32_0 = arith.constant 0 : i32
    %c0_i32_1 = arith.constant 0 : i32
    return %arg0, %c0_i32, %arg1, %c0_i32_0 : i32, i32, i32, i32
  }
  func.func @transform_1(%arg0: i32, %arg1: i32) -> (i32, i32, i32, i32) {
    %c0_i32 = arith.constant 0 : i32
    %c0_i32_0 = arith.constant 0 : i32
    %c0_i32_1 = arith.constant 0 : i32
    %c0_i32_2 = arith.constant 0 : i32
    return %arg0, %c0_i32, %c0_i32_0, %c0_i32_1 : i32, i32, i32, i32
  }
}

module attributes {stable_mosaic.version = 11 : i64} {
  func.func @_head_kernel(%arg0: i32, %arg1: memref<8x64xf32, #tpu.memory_space<vmem>>, %arg2: memref<64x32xf32, #tpu.memory_space<vmem>>, %arg3: memref<3x32xf32, #tpu.memory_space<vmem>>, %arg4: memref<32x10xf32, #tpu.memory_space<vmem>>, %arg5: memref<1x10xf32, #tpu.memory_space<vmem>>, %arg6: memref<8x10xf32, #tpu.memory_space<vmem>>, %arg7: memref<8x32xf32, #tpu.memory_space<vmem>>) attributes {dimension_semantics = [#tpu.dimension_semantics<parallel>], iteration_bounds = array<i64: 1>, scalar_prefetch = 0 : i64, scratch_operands = 0 : i64, tpu.core_type = #tpu.core_type<tc>, window_params = [{transform_indices = @transform_0, window_bounds = array<i64: 8, 64>}, {pipeline_mode = #tpu.pipeline_mode<synchronous>, transform_indices = @transform_1, window_bounds = array<i64: 64, 32>}, {pipeline_mode = #tpu.pipeline_mode<synchronous>, transform_indices = @transform_2, window_bounds = array<i64: 3, 32>}, {pipeline_mode = #tpu.pipeline_mode<synchronous>, transform_indices = @transform_3, window_bounds = array<i64: 32, 10>}, {pipeline_mode = #tpu.pipeline_mode<synchronous>, transform_indices = @transform_4, window_bounds = array<i64: 1, 10>}, {transform_indices = @transform_5, window_bounds = array<i64: 8, 10>}, {transform_indices = @transform_6, window_bounds = array<i64: 8, 32>}]} {
    %c0 = arith.constant 0 : index
    %c0_0 = arith.constant 0 : index
    %0 = vector.load %arg1[%c0, %c0_0] : memref<8x64xf32, #tpu.memory_space<vmem>>, vector<8x64xf32>
    %c0_1 = arith.constant 0 : index
    %c0_2 = arith.constant 0 : index
    %1 = vector.load %arg2[%c0_1, %c0_2] : memref<64x32xf32, #tpu.memory_space<vmem>>, vector<64x32xf32>
    %cst = arith.constant dense<0.000000e+00> : vector<8x32xf32>
    %2 = tpu.matmul %0, %1, %cst {dimension_numbers = #tpu.dot_dimension_numbers<[1], [0], [0], [1], [0, 0, 1, 1], [], []>} : vector<8x64xf32>, vector<64x32xf32>, vector<8x32xf32> -> vector<8x32xf32>
    %c0_3 = arith.constant 0 : index
    %c0_4 = arith.constant 0 : index
    %3 = vector.load %arg3[%c0_3, %c0_4] : memref<3x32xf32, #tpu.memory_space<vmem>>, vector<1x32xf32>
    %4 = vector.broadcast %3 : vector<1x32xf32> to vector<8x32xf32>
    %5 = arith.addf %2, %4 : vector<8x32xf32>
    %cst_5 = arith.constant dense<0.000000e+00> : vector<8xf32>
    %6 = vector.multi_reduction <add>, %5, %cst_5 [1] : vector<8x32xf32> to vector<8xf32>
    %7 = vector.shape_cast %6 : vector<8xf32> to vector<8x1xf32>
    %cst_6 = arith.constant 3.125000e-02 : f32
    %8 = vector.broadcast %cst_6 : f32 to vector<8x1xf32>
    %9 = arith.mulf %7, %8 : vector<8x1xf32>
    %10 = vector.broadcast %9 : vector<8x1xf32> to vector<8x32xf32>
    %11 = arith.subf %5, %10 : vector<8x32xf32>
    %12 = arith.mulf %11, %11 : vector<8x32xf32>
    %cst_7 = arith.constant dense<0.000000e+00> : vector<8xf32>
    %13 = vector.multi_reduction <add>, %12, %cst_7 [1] : vector<8x32xf32> to vector<8xf32>
    %14 = vector.shape_cast %13 : vector<8xf32> to vector<8x1xf32>
    %cst_8 = arith.constant 3.125000e-02 : f32
    %15 = vector.broadcast %cst_8 : f32 to vector<8x1xf32>
    %16 = arith.mulf %14, %15 : vector<8x1xf32>
    %cst_9 = arith.constant 9.99999997E-7 : f32
    %17 = vector.broadcast %cst_9 : f32 to vector<8x1xf32>
    %18 = arith.addf %16, %17 : vector<8x1xf32>
    %19 = math.rsqrt %18 : vector<8x1xf32>
    %20 = vector.broadcast %19 : vector<8x1xf32> to vector<8x32xf32>
    %21 = arith.mulf %11, %20 : vector<8x32xf32>
    %c1 = arith.constant 1 : index
    %c0_10 = arith.constant 0 : index
    %22 = vector.load %arg3[%c1, %c0_10] : memref<3x32xf32, #tpu.memory_space<vmem>>, vector<1x32xf32>
    %23 = vector.broadcast %22 : vector<1x32xf32> to vector<8x32xf32>
    %24 = arith.mulf %21, %23 : vector<8x32xf32>
    %c2 = arith.constant 2 : index
    %c0_11 = arith.constant 0 : index
    %25 = vector.load %arg3[%c2, %c0_11] : memref<3x32xf32, #tpu.memory_space<vmem>>, vector<1x32xf32>
    %26 = vector.broadcast %25 : vector<1x32xf32> to vector<8x32xf32>
    %27 = arith.addf %24, %26 : vector<8x32xf32>
    %c0_12 = arith.constant 0 : index
    %c0_13 = arith.constant 0 : index
    %28 = vector.load %arg7[%c0_12, %c0_13] : memref<8x32xf32, #tpu.memory_space<vmem>>, vector<8x32xf32>
    tpu.vector_store %arg7[%c0_12, %c0_13], %27 {strides = array<i32>} : memref<8x32xf32, #tpu.memory_space<vmem>>, vector<8x32xf32>,
    %c0_14 = arith.constant 0 : index
    %c0_15 = arith.constant 0 : index
    %29 = vector.load %arg4[%c0_14, %c0_15] : memref<32x10xf32, #tpu.memory_space<vmem>>, vector<32x10xf32>
    %cst_16 = arith.constant dense<0.000000e+00> : vector<8x10xf32>
    %30 = tpu.matmul %27, %29, %cst_16 {dimension_numbers = #tpu.dot_dimension_numbers<[1], [0], [0], [1], [0, 0, 1, 1], [], []>} : vector<8x32xf32>, vector<32x10xf32>, vector<8x10xf32> -> vector<8x10xf32>
    %c0_17 = arith.constant 0 : index
    %c0_18 = arith.constant 0 : index
    %31 = vector.load %arg5[%c0_17, %c0_18] : memref<1x10xf32, #tpu.memory_space<vmem>>, vector<1x10xf32>
    %32 = vector.broadcast %31 : vector<1x10xf32> to vector<8x10xf32>
    %33 = arith.addf %30, %32 : vector<8x10xf32>
    %c0_19 = arith.constant 0 : index
    %c0_20 = arith.constant 0 : index
    %34 = vector.load %arg6[%c0_19, %c0_20] : memref<8x10xf32, #tpu.memory_space<vmem>>, vector<8x10xf32>
    tpu.vector_store %arg6[%c0_19, %c0_20], %33 {strides = array<i32>} : memref<8x10xf32, #tpu.memory_space<vmem>>, vector<8x10xf32>,
    return
  }
  func.func @transform_0(%arg0: i32) -> (i32, i32) {
    %c0_i32 = arith.constant 0 : i32
    %c0_i32_0 = arith.constant 0 : i32
    return %arg0, %c0_i32 : i32, i32
  }
  func.func @transform_1(%arg0: i32) -> (i32, i32) {
    %c0_i32 = arith.constant 0 : i32
    %c0_i32_0 = arith.constant 0 : i32
    %c0_i32_1 = arith.constant 0 : i32
    return %c0_i32, %c0_i32_0 : i32, i32
  }
  func.func @transform_2(%arg0: i32) -> (i32, i32) {
    %c0_i32 = arith.constant 0 : i32
    %c0_i32_0 = arith.constant 0 : i32
    %c0_i32_1 = arith.constant 0 : i32
    return %c0_i32, %c0_i32_0 : i32, i32
  }
  func.func @transform_3(%arg0: i32) -> (i32, i32) {
    %c0_i32 = arith.constant 0 : i32
    %c0_i32_0 = arith.constant 0 : i32
    %c0_i32_1 = arith.constant 0 : i32
    return %c0_i32, %c0_i32_0 : i32, i32
  }
  func.func @transform_4(%arg0: i32) -> (i32, i32) {
    %c0_i32 = arith.constant 0 : i32
    %c0_i32_0 = arith.constant 0 : i32
    %c0_i32_1 = arith.constant 0 : i32
    return %c0_i32, %c0_i32_0 : i32, i32
  }
  func.func @transform_5(%arg0: i32) -> (i32, i32) {
    %c0_i32 = arith.constant 0 : i32
    %c0_i32_0 = arith.constant 0 : i32
    return %arg0, %c0_i32 : i32, i32
  }
  func.func @transform_6(%arg0: i32) -> (i32, i32) {
    %c0_i32 = arith.constant 0 : i32
    %c0_i32_0 = arith.constant 0 : i32
    return %arg0, %c0_i32 : i32, i32
  }
}

</mosaic_0001>

<llo_original>
// kernel: model_wrapper_v7.2
$region0: #{model_wrapper_v7.2}
  #allocation0 [shape = 'u32[]', space=smem, size = 0x4, offset = 0x4, fixed_abs, tag = 'smem constant byte address 0x4 - core index']
  #allocation1 [shape = 'u32[144,128]{1,0:T(1,128)}', space=vmem, size = 0x12000, scoped, tag = 'internal scratch']
  %s0 = inlined_call_operand.hbm [shape: f32[2,4,16,16], index: 0, kind: input, shape index: {}]
  %s1 = inlined_call_operand.vmem [shape: f32[2,4,8,16], index: 1, kind: output, shape index: {}]
  %s2 = sld [smem:[#allocation0]]
  $region45: #{model_wrapper_v7.2} parent=0
    _
  %s4 = ssub.s32 1, %s2
  %s5 = scalar_select 0, %s4, %s2
  $region1: #{model_wrapper_v7.2} parent=0
    #allocation2 [shape = 'u8[65536]{0}', space=vmem, size = 0x10000, scoped, tag = 'input window, operand 0']
    #allocation3 [shape = 's32[2]{0}', space=sflag, size = 0x8, scoped, tag = 'scoped memory for model_wrapper_v7.2']
    %6 = vsyncpa [#allocation3], 0
    %s7 = scalar_lea.sflag [#allocation3], 1
    %8 = vsyncpa %s7, 0
    loop: start=0, step=1, limit=4
    $region2: #{model_wrapper_v7.2} parent=1 // loop_pre_header
      _
    $region3: #{model_wrapper_v7.2} parent=1 // loop_header
      %s10 = sphi 0, %s14
      %p11 = scmp.ge.s32.totalorder %s10, 4
      %s17 = sphi 0, %s29
      %s18 = sphi 0, %s25
      %s19 = sphi 0, %s17
      %s20 = sphi 0, %s18
      %s21 = sphi 0, %s19
      %s22 = sphi 0, %s20
      %s34 = sphi 0, %s36
      %s37 = sphi 0, %s34
      %s38 = sphi 0, %s37
      %s54 = sphi 0, %s38
      %s60 = sphi 0, %s62
      %s63 = sphi 0, %s60
      %s64 = sphi 0, %s63
      %s80 = sphi 0, %s64
    $region4: #{model_wrapper_v7.2} parent=1 // loop_header_branch
      %13 = sbr.rel (%p11) target = $region8
    $region5: #{model_wrapper_v7.2} parent=1 // loop_body
      %s15 = ssub.s32 %s10, 1
      %s16 = ssub.s32 %s10, 2
      %s23 = sadd.s32 1, %s18
      %p24 = scmp.ge.s32.totalorder %s23, 1
      %s25 = scalar_select %p24, 0, %s23
      %s26 = sadd.s32 1, %s17
      %s27 = scalar_select %p24, %s26, %s17
      %p28 = scmp.ge.s32.totalorder %s27, 2
      %s29 = scalar_select %p28, 0, %s27
      %s30 = ssub.s32 %s17, %s29
      %s31 = ssub.s32 %s18, %s25
      %s32 = sor.u32 %s30, %s31
      %p33 = scmp.eq.s32.totalorder %s32, 0
      %s35 = sadd.s32 %s34, 1
      %s36 = scalar_select %p33, %s34, %s35
      %p39 = pneg %p33
      %p40 = scmp.eq.s32.totalorder %s10, 1
      %p41 = por %p39, %p40
      %p42 = scmp.ne.s32.totalorder %s34, %s37
      %p43 = scmp.eq.s32.totalorder %s10, 0
      %p44 = por %p42, %p43
      %p45 = scmp.ne.s32.totalorder %s34, %s37
      %p46 = scmp.eq.s32.totalorder %s15, 1
      %p47 = por %p45, %p46
      %p48 = scmp.ne.s32.totalorder %s37, %s38
      %p49 = scmp.eq.s32.totalorder %s15, 0
      %p50 = por %p48, %p49
      %p51 = scmp.ne.s32.totalorder %s37, %s38
      %p52 = scmp.eq.s32.totalorder %s16, 1
      %p53 = por %p51, %p52
      %p55 = scmp.ne.s32.totalorder %s38, %s54
      %p56 = scmp.eq.s32.totalorder %s16, 0
      %p57 = por %p55, %p56
      %s58 = ssub.s32 %s17, %s29
      %p59 = scmp.eq.s32.totalorder %s58, 0
      %s61 = sadd.s32 %s60, 1
      %s62 = scalar_select %p59, %s60, %s61
      %p65 = pneg %p59
      %p66 = scmp.eq.s32.totalorder %s10, 1
      %p67 = por %p65, %p66
      %p68 = scmp.ne.s32.totalorder %s60, %s63
      %p69 = scmp.eq.s32.totalorder %s10, 0
      %p70 = por %p68, %p69
      %p71 = scmp.ne.s32.totalorder %s60, %s63
      %p72 = scmp.eq.s32.totalorder %s15, 1
      %p73 = por %p71, %p72
      %p74 = scmp.ne.s32.totalorder %s63, %s64
      %p75 = scmp.eq.s32.totalorder %s15, 0
      %p76 = por %p74, %p75
      %p77 = scmp.ne.s32.totalorder %s63, %s64
      %p78 = scmp.eq.s32.totalorder %s16, 1
      %p79 = por %p77, %p78
      %p81 = scmp.ne.s32.totalorder %s64, %s80
      %p82 = scmp.eq.s32.totalorder %s16, 0
      %p83 = por %p81, %p82
      %p84 = scmp.le.s32.totalorder 1, %s10
      %p85 = scmp.lt.s32.totalorder %s10, 3
      %p86 = pnand %p84, %p85
      %p87 = pneg %p86
      // Predicated region
      $region9: #{model_wrapper_v7.2} parent=5 // pred_check
        _
      $region10: #{model_wrapper_v7.2} parent=5 // pred_check_branch
        %89 = sbr.rel (%p86) target = $region12
      $region11: #{model_wrapper_v7.2} parent=5 // pred_region
        %s90 = ssub.s32 %s10, 1
      $region12: #{model_wrapper_v7.2} parent=5 // pred_fallthru
        _
      %p91 = scmp.lt.s32.totalorder %s10, 2
      // Predicated region
      $region13: #{model_wrapper_v7.2} parent=5 // pred_check
        %p92 = pneg %p91
      $region14: #{model_wrapper_v7.2} parent=5 // pred_check_branch
        %94 = sbr.rel (%p92) target = $region16
      $region15: #{model_wrapper_v7.2} parent=5 // pred_region
        // Predicated region
        $region17: #{model_wrapper_v7.2} parent=15 // pred_check
          %p95 = pneg %p44
        $region18: #{model_wrapper_v7.2} parent=15 // pred_check_branch
          %97 = sbr.rel (%p95) target = $region20
        $region19: #{model_wrapper_v7.2} parent=15 // pred_region
          %s98 = sand.u32 %s34, 1
          %s99 = scalar_lea.sflag [#allocation3], %s98
          %s100 = sand.u32 %s34, 1
          %s101 = smul.addr %s100, 64
          %s102 = scalar_lea.vmem [#allocation2], %s101
          %s103 = smul.u32 2, %s18
          %s105 = ssub.s32 1024, 1024
          %106 = vsyncadd %s99, %s105
          %s107 = smul.addr %s17, 8
          %s108 = sadd.s32 %s103, %s107
          %s109 = smul.addr %s108, 128
          %s110 = scalar_lea.hbm %s0, %s109
          %s111 = sshll.u32 %s102, 4
          %s112 = int_to_ptr.vmem [resolvable:$true] %s111
          %117 = dma.hbm_to_vmem [thread:$0]  %s110, 1024, %s112, %s99, 128, 128, 8
        $region20: #{model_wrapper_v7.2} parent=15 // pred_fallthru
          _
      $region16: #{model_wrapper_v7.2} parent=5 // pred_fallthru
        _
      %p118 = scmp.le.s32.totalorder 1, %s10
      %p119 = scmp.lt.s32.totalorder %s10, 3
      %p120 = pnand %p118, %p119
      %p121 = pneg %p120
      // Predicated region
      $region21: #{model_wrapper_v7.2} parent=5 // pred_check
        _
      $region22: #{model_wrapper_v7.2} parent=5 // pred_check_branch
        %123 = sbr.rel (%p120) target = $region24
      $region23: #{model_wrapper_v7.2} parent=5 // pred_region
        %s124 = ssub.s32 %s10, 1
        %s125 = sand.u32 %s37, 1
        %s126 = scalar_lea.sflag [#allocation3], %s125
        %s127 = sand.u32 %s37, 1
        %s128 = smul.addr %s127, 64
        %s129 = scalar_lea.vmem [#allocation2], %s128
        // Predicated region
        $region25: #{model_wrapper_v7.2} parent=23 // pred_check
          %p130 = pneg %p50
        $region26: #{model_wrapper_v7.2} parent=23 // pred_check_branch
          %132 = sbr.rel (%p130) target = $region28
        $region27: #{model_wrapper_v7.2} parent=23 // pred_region
          %133 = dma.done %s126, 1024
        $region28: #{model_wrapper_v7.2} parent=23 // pred_fallthru
          _
        %s134 = sand.u32 %s37, 1
        %s135 = scalar_lea.sflag [#allocation3], %s134
        %s136 = sand.u32 %s37, 1
        %s137 = smul.addr %s136, 64
        %s138 = scalar_lea.vmem [#allocation2], %s137
        %p139 = pneg %p50
        %p140 = pneg %p47
        %p141 = pneg %p76
        %p142 = pneg %p73
        %p143 = scmp.lt.s32.totalorder %s19, 1
        %s144 = scalar_select %p143, %s19, 1
        %s145 = smul.addr %s144, 4
        %s146 = smul.addr %s145, 8
        %s147 = scalar_lea.vmem %s1, %s146
        %s148 = smul.u32 2, %s20
        %p149 = scmp.lt.s32.totalorder %s19, 1
        %s150 = scalar_select %p149, %s19, 1
        %s151 = smul.addr %s150, 4
        %s152 = smul.addr %s151, 8
        %s153 = scalar_lea.vmem %s1, %s152
        %p154 = scmp.eq.s32.totalorder %s20, 0
        // Predicated region
        $region29: #{model_wrapper_v7.2} parent=23 // pred_check
          %p155 = pneg %p154
        $region30: #{model_wrapper_v7.2} parent=23 // pred_check_branch
          %157 = sbr.rel (%p155) target = $region32
        $region31: #{model_wrapper_v7.2} parent=23 // pred_region
          %vm158 = vcmask 130048
          %159 = vst.msk [vmem:[%s153] sm:$0xff] %vm158, 0.0
          %160 = vst.msk [vmem:[%s153 + $0x8] sm:$0xff] %vm158, 0.0
          %161 = vst.msk [vmem:[%s153 + $0x10] sm:$0xff] %vm158, 0.0
          %162 = vst.msk [vmem:[%s153 + $0x18] sm:$0xff] %vm158, 0.0
        $region32: #{model_wrapper_v7.2} parent=23 // pred_fallthru
          _
        %v163 = vld [vmem:[%s129] sm:$0xff]
        %v164 = vld [vmem:[%s129 + $0x8] sm:$0xff]
        %v165 = vld [vmem:[%s129 + $0x10] sm:$0xff]
        %v166 = vld [vmem:[%s129 + $0x18] sm:$0xff]
        %v167 = vld [vmem:[%s129 + $0x20] sm:$0xff]
        %v168 = vld [vmem:[%s129 + $0x28] sm:$0xff]
        %v169 = vld [vmem:[%s129 + $0x30] sm:$0xff]
        %v170 = vld [vmem:[%s129 + $0x38] sm:$0xff]
        %v171 = vadd.f32 %v163, %v164
        %v172 = vadd.f32 %v165, %v166
        %v173 = vadd.f32 %v167, %v168
        %v174 = vadd.f32 %v169, %v170
        %v175 = vld [vmem:[%s153] sm:$0xff]
        %v176 = vld [vmem:[%s153 + $0x8] sm:$0xff]
        %v177 = vld [vmem:[%s153 + $0x10] sm:$0xff]
        %v178 = vld [vmem:[%s153 + $0x18] sm:$0xff]
        %v179 = vadd.f32 %v175, %v171
        %v180 = vadd.f32 %v176, %v172
        %v181 = vadd.f32 %v177, %v173
        %v182 = vadd.f32 %v178, %v174
        %vm183 = vcmask 130048
        %184 = vst.msk [vmem:[%s153] sm:$0xff] %vm183, %v179
        %185 = vst.msk [vmem:[%s153 + $0x8] sm:$0xff] %vm183, %v180
        %186 = vst.msk [vmem:[%s153 + $0x10] sm:$0xff] %vm183, %v181
        %187 = vst.msk [vmem:[%s153 + $0x18] sm:$0xff] %vm183, %v182
        %p188 = scmp.lt.s32.totalorder %s19, 1
        %s189 = scalar_select %p188, %s19, 1
        %s190 = smul.addr %s189, 4
        %s191 = smul.addr %s190, 8
        %s192 = scalar_lea.vmem %s1, %s191
        // Predicated region
        $region33: #{model_wrapper_v7.2} parent=23 // pred_check
          %p193 = pneg %p73
        $region34: #{model_wrapper_v7.2} parent=23 // pred_check_branch
          %195 = sbr.rel (%p193) target = $region36
        $region35: #{model_wrapper_v7.2} parent=23 // pred_region
          _
        $region36: #{model_wrapper_v7.2} parent=23 // pred_fallthru
          _
      $region24: #{model_wrapper_v7.2} parent=5 // pred_fallthru
        _
      %p196 = scmp.le.s32.totalorder 2, %s10
      // Predicated region
      $region37: #{model_wrapper_v7.2} parent=5 // pred_check
        %p197 = pneg %p196
      $region38: #{model_wrapper_v7.2} parent=5 // pred_check_branch
        %199 = sbr.rel (%p197) target = $region40
      $region39: #{model_wrapper_v7.2} parent=5 // pred_region
        %s200 = ssub.s32 %s10, 2
        // Predicated region
        $region41: #{model_wrapper_v7.2} parent=39 // pred_check
          %p201 = pneg %p79
        $region42: #{model_wrapper_v7.2} parent=39 // pred_check_branch
          %203 = sbr.rel (%p201) target = $region44
        $region43: #{model_wrapper_v7.2} parent=39 // pred_region
          %p204 = scmp.lt.s32.totalorder %s21, 1
          %s205 = scalar_select %p204, %s21, 1
          %s206 = smul.addr %s205, 4
          %s207 = smul.addr %s206, 8
          %s208 = scalar_lea.vmem %s1, %s207
        $region44: #{model_wrapper_v7.2} parent=39 // pred_fallthru
          _
      $region40: #{model_wrapper_v7.2} parent=5 // pred_fallthru
        _
    $region6: #{model_wrapper_v7.2} parent=1 // loop_footer
      %s14 = sadd.s32 1, %s10
    $region7: #{model_wrapper_v7.2} parent=1 // loop_footer_branch
      %9 = sbr.rel target = $region3
    $region8: #{model_wrapper_v7.2} parent=1 // loop_exit
      _
    %209 = vsyncpa [#allocation3], 1
    %s210 = scalar_lea.sflag [#allocation3], 1
    %211 = vsyncpa %s210, 1

// kernel: model_wrapper_v7.3
$region0: #{model_wrapper_v7.3}
  #allocation0 [shape = 'u32[]', space=smem, size = 0x4, offset = 0x4, fixed_abs, tag = 'smem constant byte address 0x4 - core index']
  #allocation1 [shape = 'u32[144,128]{1,0:T(1,128)}', space=vmem, size = 0x12000, scoped, tag = 'internal scratch']
  %s0 = inlined_call_operand.vmem [shape: f32[8,64], index: 0, kind: input, shape index: {}]
  %s1 = inlined_call_operand.vmem [shape: f32[64,32], index: 1, kind: input, shape index: {}]
  %s2 = inlined_call_operand.vmem [shape: f32[3,32], index: 2, kind: input, shape index: {}]
  %s3 = inlined_call_operand.vmem [shape: f32[32,10], index: 3, kind: input, shape index: {}]
  %s4 = inlined_call_operand.vmem [shape: f32[1,10], index: 4, kind: input, shape index: {}]
  %s5 = inlined_call_operand.vmem [shape: f32[8,10], index: 5, kind: output, shape index: {0}]
  %s6 = inlined_call_operand.vmem [shape: f32[8,32], index: 6, kind: output, shape index: {1}]
  %7 = xla_tuple %s5, %s6
  %s8 = sld [smem:[#allocation0]]
  $region38: #{model_wrapper_v7.3} parent=0
    _
  %s10 = ssub.s32 1, %s8
  %s11 = scalar_select 0, %s10, %s8
  // Predicated region
  $region2: #{model_wrapper_v7.3} parent=0 // pred_check
    _
  $region3: #{model_wrapper_v7.3} parent=0 // pred_check_branch
    %13 = sbr.rel (0) target = $region5
  $region4: #{model_wrapper_v7.3} parent=0 // pred_region
    _
  $region5: #{model_wrapper_v7.3} parent=0 // pred_fallthru
    _
  // Predicated region
  $region6: #{model_wrapper_v7.3} parent=0 // pred_check
    _
  $region7: #{model_wrapper_v7.3} parent=0 // pred_check_branch
    %15 = sbr.rel (0) target = $region9
  $region8: #{model_wrapper_v7.3} parent=0 // pred_region
    _
  $region9: #{model_wrapper_v7.3} parent=0 // pred_fallthru
    _
  // Predicated region
  $region10: #{model_wrapper_v7.3} parent=0 // pred_check
    _
  $region11: #{model_wrapper_v7.3} parent=0 // pred_check_branch
    %17 = sbr.rel (0) target = $region13
  $region12: #{model_wrapper_v7.3} parent=0 // pred_region
    _
  $region13: #{model_wrapper_v7.3} parent=0 // pred_fallthru
    _
  // Predicated region
  $region14: #{model_wrapper_v7.3} parent=0 // pred_check
    _
  $region15: #{model_wrapper_v7.3} parent=0 // pred_check_branch
    %19 = sbr.rel (0) target = $region17
  $region16: #{model_wrapper_v7.3} parent=0 // pred_region
    _
  $region17: #{model_wrapper_v7.3} parent=0 // pred_fallthru
    _
  // Predicated region
  $region18: #{model_wrapper_v7.3} parent=0 // pred_check
    _
  $region19: #{model_wrapper_v7.3} parent=0 // pred_check_branch
    %21 = sbr.rel (0) target = $region21
  $region20: #{model_wrapper_v7.3} parent=0 // pred_region
    _
  $region21: #{model_wrapper_v7.3} parent=0 // pred_fallthru
    _
  %v22 = vld [vmem:[%s0] sm:$0xff]
  %v23 = vld [vmem:[%s1] sm:$0xff]
  %v24 = vld [vmem:[%s1 + $0x8] sm:$0xff]
  %v25 = vld [vmem:[%s1 + $0x10] sm:$0xff]
  %v26 = vld [vmem:[%s1 + $0x18] sm:$0xff]
  %v27 = vld [vmem:[%s1 + $0x20] sm:$0xff]
  %v28 = vld [vmem:[%s1 + $0x28] sm:$0xff]
  %v29 = vld [vmem:[%s1 + $0x30] sm:$0xff]
  %v30 = vld [vmem:[%s1 + $0x38] sm:$0xff]
  %v31 = vld [vmem:[%s2] sm:$0x1]
  %v32 = vlaneseq
  %v33 = vshrl.u32 %v32, 7
  %v34 = vsub.s32 0, %v33
  %v35 = vrot.slane %v31, %v34
  %vm36 = vcmask 523264
  %v38 = vsel %vm36, %v22, 0
  %40 = vmatprep.subr.mxu0 0.0
  %41 = vmatpush1.msra.mxu0 %v23
  %42 = vmatprep.subr.mxu0 0.0
  %43 = vmatpush1.msra.mxu0 %v24
  %44 = vmatprep.subr.mxu0 0.0
  %45 = vmatpush1.msra.mxu0 %v25
  %46 = vmatprep.subr.mxu0 0.0
  %47 = vmatpush1.msra.mxu0 %v26
  %48 = vmatprep.subr.mxu0 0.0
  %49 = vmatpush1.msra.mxu0 %v27
  %50 = vmatprep.subr.mxu0 0.0
  %51 = vmatpush1.msra.mxu0 %v28
  %52 = vmatprep.subr.mxu0 0.0
  %53 = vmatpush1.msra.mxu0 %v29
  %54 = vmatprep.subr.mxu0 0.0
  %55 = vmatpush1.msra.mxu0 %v30
  %56 = vmatprep.subr.mxu0 0.0
  %57 = vmatpush1.msra.mxu0 0.0
  %58 = vmatprep.subr.mxu0 0.0
  %59 = vmatpush1.msra.mxu0 0.0
  %60 = vmatprep.subr.mxu0 0.0
  %61 = vmatpush1.msra.mxu0 0.0
  %62 = vmatprep.subr.mxu0 0.0
  %63 = vmatpush1.msra.mxu0 0.0
  %64 = vmatprep.subr.mxu0 0.0
  %65 = vmatpush1.msra.mxu0 0.0
  %66 = vmatprep.subr.mxu0 0.0
  %67 = vmatpush1.msra.mxu0 0.0
  %68 = vmatprep.subr.mxu0 0.0
  %69 = vmatpush1.msra.mxu0 0.0
  %70 = vmatprep.subr.mxu0 0.0
  %71 = vmatpush1.msra.mxu0 0.0
  %72 = vmatprep.subr.mxu0 0.0
  %73 = vmatpush1.msra.mxu0 0.0
  %74 = vmatprep.subr.mxu0 0.0
  %75 = vmatpush1.msra.mxu0 0.0
  %76 = vmatprep.subr.mxu0 0.0
  %77 = vmatpush1.msra.mxu0 0.0
  %78 = vmatprep.subr.mxu0 0.0
  %79 = vmatpush1.msra.mxu0 0.0
  %80 = vmatprep.subr.mxu0 0.0
  %81 = vmatpush1.msra.mxu0 0.0
  %82 = vmatprep.subr.mxu0 0.0
  %83 = vmatpush1.msra.mxu0 0.0
  %84 = vmatprep.subr.mxu0 0.0
  %85 = vmatpush1.msra.mxu0 0.0
  %86 = vmatprep.subr.mxu0 0.0
  %87 = vmatpush1.msra.mxu0 0.0
  %88 = vmatprep.subr.mxu0 0.0
  %89 = vmatpush1.msra.mxu0 0.0
  %90 = vmatprep.subr.mxu0 0.0
  %91 = vmatpush1.msra.mxu0 0.0
  %92 = vmatprep.subr.mxu0 0.0
  %93 = vmatpush1.msra.mxu0 0.0
  %94 = vmatprep.subr.mxu0 0.0
  %95 = vmatpush1.msra.mxu0 0.0
  %96 = vmatprep.subr.mxu0 0.0
  %97 = vmatpush1.msra.mxu0 0.0
  %98 = vmatprep.subr.mxu0 0.0
  %99 = vmatpush1.msra.mxu0 0.0
  %100 = vmatprep.subr.mxu0 0.0
  %101 = vmatpush1.msra.mxu0 0.0
  %102 = vmatprep.subr.mxu0 0.0
  %103 = vmatpush1.msra.mxu0 0.0
  %104 = vmatprep.mubr.f32.mxu0 0.0
  %105 = vmatmul.mubr.f32.gmra.mrb[0].mxu0 %v38
  %v106 = vpop.f32.mrb[0].mxu0
  %v107 = vadd.f32 %v35, %v106
  %v108 = vpop.f32.mrb[0].mxu0
  %109 = vdwg.mxu0
  %vm110 = vcmask 261120
  %v111 = vsel %vm110, %v107, 0.0
  %112 = vadd.xlane.f32.xlu0 %v111
  %v113 = vpop.xlane.xlu0 %112
  %v114 = vmul.f32 %v113, 0.03125
  %v115 = vsub.f32 %v107, %v114
  %v116 = vmul.f32 %v115, %v115
  %v117 = vsel %vm110, %v116, 0.0
  %118 = vadd.xlane.f32.xlu0 %v117
  %v119 = vpop.xlane.xlu0 %118
  %v120 = vmul.f32 %v119, 0.03125
  %v121 = vadd.f32 %v120, 1e-06
  %v122 = vrsqrt.pop %v121
  %v123 = vmul.f32 %v115, %v122
  %v124 = vld [vmem:[%s2 + $0x1] sm:$0x1]
  %v125 = vlaneseq
  %v126 = vshrl.u32 %v125, 7
  %v127 = vsub.s32 0, %v126
  %v128 = vrot.slane %v124, %v127
  %v129 = vmul.f32 %v123, %v128
  %v130 = vld [vmem:[%s2 + $0x2] sm:$0x1]
  %v131 = vlaneseq
  %v132 = vshrl.u32 %v131, 7
  %v133 = vsub.s32 0, %v132
  %v134 = vrot.slane %v130, %v133
  %v135 = vadd.f32 %v129, %v134
  %136 = vst.msk [vmem:[%s6] sm:$0xff] %vm110, %v135
  %v137 = vld [vmem:[%s3] sm:$0xff]
  %v138 = vld [vmem:[%s3 + $0x8] sm:$0xff]
  %v139 = vld [vmem:[%s3 + $0x10] sm:$0xff]
  %v140 = vld [vmem:[%s3 + $0x18] sm:$0xff]
  %v141 = vld [vmem:[%s4] sm:$0x1]
  %v143 = vlaneseq
  %v144 = vshrl.u32 %v143, 7
  %v145 = vsub.s32 0, %v144
  %v146 = vrot.slane %v141, %v145
  %v149 = vsel %vm110, %v135, 0
  %151 = vmatprep.subr.mxu0 0.0
  %152 = vmatpush1.msra.mxu0 %v137
  %153 = vmatprep.subr.mxu0 0.0
  %154 = vmatpush1.msra.mxu0 %v138
  %155 = vmatprep.subr.mxu0 0.0
  %156 = vmatpush1.msra.mxu0 %v139
  %157 = vmatprep.subr.mxu0 0.0
  %158 = vmatpush1.msra.mxu0 %v140
  %159 = vmatprep.subr.mxu0 0.0
  %160 = vmatpush1.msra.mxu0 0.0
  %161 = vmatprep.subr.mxu0 0.0
  %162 = vmatpush1.msra.mxu0 0.0
  %163 = vmatprep.subr.mxu0 0.0
  %164 = vmatpush1.msra.mxu0 0.0
  %165 = vmatprep.subr.mxu0 0.0
  %166 = vmatpush1.msra.mxu0 0.0
  %167 = vmatprep.subr.mxu0 0.0
  %168 = vmatpush1.msra.mxu0 0.0
  %169 = vmatprep.subr.mxu0 0.0
  %170 = vmatpush1.msra.mxu0 0.0
  %171 = vmatprep.subr.mxu0 0.0
  %172 = vmatpush1.msra.mxu0 0.0
  %173 = vmatprep.subr.mxu0 0.0
  %174 = vmatpush1.msra.mxu0 0.0
  %175 = vmatprep.subr.mxu0 0.0
  %176 = vmatpush1.msra.mxu0 0.0
  %177 = vmatprep.subr.mxu0 0.0
  %178 = vmatpush1.msra.mxu0 0.0
  %179 = vmatprep.subr.mxu0 0.0
  %180 = vmatpush1.msra.mxu0 0.0
  %181 = vmatprep.subr.mxu0 0.0
  %182 = vmatpush1.msra.mxu0 0.0
  %183 = vmatprep.subr.mxu0 0.0
  %184 = vmatpush1.msra.mxu0 0.0
  %185 = vmatprep.subr.mxu0 0.0
  %186 = vmatpush1.msra.mxu0 0.0
  %187 = vmatprep.subr.mxu0 0.0
  %188 = vmatpush1.msra.mxu0 0.0
  %189 = vmatprep.subr.mxu0 0.0
  %190 = vmatpush1.msra.mxu0 0.0
  %191 = vmatprep.subr.mxu0 0.0
  %192 = vmatpush1.msra.mxu0 0.0
  %193 = vmatprep.subr.mxu0 0.0
  %194 = vmatpush1.msra.mxu0 0.0
  %195 = vmatprep.subr.mxu0 0.0
  %196 = vmatpush1.msra.mxu0 0.0
  %197 = vmatprep.subr.mxu0 0.0
  %198 = vmatpush1.msra.mxu0 0.0
  %199 = vmatprep.subr.mxu0 0.0
  %200 = vmatpush1.msra.mxu0 0.0
  %201 = vmatprep.subr.mxu0 0.0
  %202 = vmatpush1.msra.mxu0 0.0
  %203 = vmatprep.subr.mxu0 0.0
  %204 = vmatpush1.msra.mxu0 0.0
  %205 = vmatprep.subr.mxu0 0.0
  %206 = vmatpush1.msra.mxu0 0.0
  %207 = vmatprep.subr.mxu0 0.0
  %208 = vmatpush1.msra.mxu0 0.0
  %209 = vmatprep.subr.mxu0 0.0
  %210 = vmatpush1.msra.mxu0 0.0
  %211 = vmatprep.subr.mxu0 0.0
  %212 = vmatpush1.msra.mxu0 0.0
  %213 = vmatprep.subr.mxu0 0.0
  %214 = vmatpush1.msra.mxu0 0.0
  %215 = vmatprep.mubr.f32.mxu0 0.0
  %216 = vmatmul.mubr.f32.gmra.mrb[0].mxu0 %v149
  %v217 = vpop.f32.mrb[0].mxu0
  %v218 = vadd.f32 %v146, %v217
  %v219 = vpop.f32.mrb[0].mxu0
  %220 = vdwg.mxu0
  %vm221 = vcmask 80896
  %222 = vst.msk [vmem:[%s5] sm:$0xff] %vm221, %v218
  // Predicated region
  $region22: #{model_wrapper_v7.3} parent=0 // pred_check
    _
  $region23: #{model_wrapper_v7.3} parent=0 // pred_check_branch
    %224 = sbr.rel (0) target = $region25
  $region24: #{model_wrapper_v7.3} parent=0 // pred_region
    _
  $region25: #{model_wrapper_v7.3} parent=0 // pred_fallthru
    _
  // Predicated region
  $region26: #{model_wrapper_v7.3} parent=0 // pred_check
    _
  $region27: #{model_wrapper_v7.3} parent=0 // pred_check_branch
    %226 = sbr.rel (0) target = $region29
  $region28: #{model_wrapper_v7.3} parent=0 // pred_region
    _
  $region29: #{model_wrapper_v7.3} parent=0 // pred_fallthru
    _
  // Predicated region
  $region30: #{model_wrapper_v7.3} parent=0 // pred_check
    _
  $region31: #{model_wrapper_v7.3} parent=0 // pred_check_branch
    %228 = sbr.rel (0) target = $region33
  $region32: #{model_wrapper_v7.3} parent=0 // pred_region
    _
  $region33: #{model_wrapper_v7.3} parent=0 // pred_fallthru
    _
  // Predicated region
  $region34: #{model_wrapper_v7.3} parent=0 // pred_check
    _
  $region35: #{model_wrapper_v7.3} parent=0 // pred_check_branch
    %230 = sbr.rel (0) target = $region37
  $region36: #{model_wrapper_v7.3} parent=0 // pred_region
    _
  $region37: #{model_wrapper_v7.3} parent=0 // pred_fallthru
    _

</llo_original>
